<compile_context>
chip_gen: v7x
topology: tpu7x:2x2x1
jax: 0.10.0
libtpu: 0.0.40
codegen_flags: <defaults>
</compile_context>

<pallas_src>
from typing import NamedTuple, Optional

import jax
import jax.numpy as jnp
import numpy as np
from jax.experimental import pallas as pl
from jax.experimental.pallas import tpu as pltpu

LANE = 128
SUBLANE = 8

_VMEM_LIMIT_BYTES = 32 * 1024 * 1024       # <= scoped/physical VMEM on v5e/v6e/v7x
_STREAM_VMEM_BUDGET = 20 * 1024 * 1024     # total double-buffered streamed bytes
_MAX_BYTES_PER_BUFFER = 4 * 1024 * 1024    # per-stream block cap
_MIN_KERNEL_ELEMENTS = 8192                # below this, plain jnp beats a launch


def _cdiv(a: int, b: int) -> int:
    return -(-a // b)


# ----------------------------------------------------------------------------
# Weight construction (identical to the PyTorch __init__).
# ----------------------------------------------------------------------------
def make_weights(horizon: int = 20, no_weight: bool = False) -> jnp.ndarray:
    if no_weight:
        w = np.ones(horizon, dtype=np.float64)
    elif horizon <= 10:
        w = np.flip(np.arange(horizon, dtype=np.float64) ** 3)
    else:
        w = np.flip(np.arange(10, dtype=np.float64) ** 3)
        w = np.append(w, [1.0] * (horizon - 10))
    w = (w / w.sum()).astype(np.float32)
    w = np.repeat(w, 2)  # repeat_interleave(2) -> length 2 * horizon
    return jnp.asarray(w, dtype=jnp.float32)


# ----------------------------------------------------------------------------
# Tiling plan: grouping factor, tile size, grid shape.
# ----------------------------------------------------------------------------
class _Plan(NamedTuple):
    group: int           # rows of the original (N, D) array fused per packed row
    d_eff: int            # packed row width = group * D
    rows: int              # packed rows = N // group
    tile_rows: int        # packed rows per grid step (multiple of 8)
    n_blocks: int         # ceil(rows / tile_rows)
    ncores: int           # leading "parallel" grid axis (2 -> dual TC on v7x)
    tiles_per_core: int   # "arbitrary" grid axis length


def _plan(n_rows: int, d: int, itemsize: int, n_streams: int,
          max_rows_per_tile: Optional[int] = None) -> Optional[_Plan]:
    if n_rows * d < _MIN_KERNEL_ELEMENTS:
        return None                       # tiny: jnp fast path
    group = 1
    for cand in (16, 8, 4, 2):            # widen the lane dim as much as N allows
        if n_rows % cand == 0:
            group = cand
            break
    d_eff = d * group
    rows = n_rows // group
    if rows < SUBLANE:
        return None                       # degenerate layout: jnp fast path
    padded_lanes = _cdiv(d_eff, LANE) * LANE
    per_buf = min(_STREAM_VMEM_BUDGET // (2 * n_streams), _MAX_BYTES_PER_BUFFER)
    cap = max(SUBLANE, (per_buf // (padded_lanes * itemsize)) // SUBLANE * SUBLANE)
    tile_rows = min(cap, (rows // SUBLANE) * SUBLANE)
    if max_rows_per_tile is not None:
        tile_rows = min(tile_rows,
                        max(SUBLANE, (max_rows_per_tile // SUBLANE) * SUBLANE))
    n_blocks = _cdiv(rows, tile_rows)
    ncores = 2 if n_blocks >= 2 else 1    # harmless on single-TC chips
    tiles_per_core = _cdiv(n_blocks, ncores)
    return _Plan(group, d_eff, rows, tile_rows, n_blocks, ncores, tiles_per_core)


# ----------------------------------------------------------------------------
# Kernel builders.  Per step: elementwise squares -> row-axis partial reduce ->
# accumulate into the resident (8, D_eff) output partial.  Only boundary /
# clamped-duplicate blocks pay for the row mask.
# ----------------------------------------------------------------------------
def _build_kernel(plan: _Plan, mode: str):
    tile_rows, d_eff = plan.tile_rows, plan.d_eff
    rows, tpc = plan.rows, plan.tiles_per_core
    groups = tile_rows // SUBLANE

    def _reduce(x):
        # (tile_rows, d_eff) -> (8, d_eff); sublane-aligned reshape, VALU adds only.
        return x.reshape(groups, SUBLANE, d_eff).sum(axis=0)

    def _accumulate(o_ref, terms, row0):
        @pl.when(row0 + tile_rows <= rows)
        def _full():
            for k, term in enumerate(terms):
                o_ref[0, k] += _reduce(term)

        @pl.when(row0 + tile_rows > rows)
        def _ragged():
            rid = jax.lax.broadcasted_iota(jnp.int32, (tile_rows, 1), 0) + row0
            keep = rid < rows
            for k, term in enumerate(terms):
                o_ref[0, k] += _reduce(jnp.where(keep, term, 0.0))

    def _prologue(o_ref):
        c = pl.program_id(0)
        i = pl.program_id(1)

        @pl.when(i == 0)
        def _init():
            o_ref[...] = jnp.zeros_like(o_ref)

        return (c * tpc + i) * tile_rows

    if mode == "diff":
        def kernel(p_ref, t_ref, o_ref):
            row0 = _prologue(o_ref)
            diff = p_ref[...].astype(jnp.float32) - t_ref[...].astype(jnp.float32)
            _accumulate(o_ref, [diff * diff], row0)
        return kernel, 1

    if mode == "square":
        def kernel(x_ref, o_ref):
            row0 = _prologue(o_ref)
            x = x_ref[...].astype(jnp.float32)
            _accumulate(o_ref, [x * x], row0)
        return kernel, 1

    # fused: both loss terms in one HBM pass (be_static has the same shape)
    def kernel(p_ref, t_ref, b_ref, o_ref):
        row0 = _prologue(o_ref)
        diff = p_ref[...].astype(jnp.float32) - t_ref[...].astype(jnp.float32)
        b = b_ref[...].astype(jnp.float32)
        _accumulate(o_ref, [diff * diff, b * b], row0)
    return kernel, 2


# ----------------------------------------------------------------------------
# pallas_call launcher + epilogue.
# ----------------------------------------------------------------------------
def _launch(kernel, n_terms, arrays, plan: _Plan):
    tpc, n_blocks = plan.tiles_per_core, plan.n_blocks

    if plan.ncores * tpc == n_blocks:
        def data_map(c, i):
            return (c * tpc + i, 0)
    else:
        def data_map(c, i):
            # Clamp core-1's overhanging block; the kernel fully masks it.
            return (jnp.minimum(c * tpc + i, n_blocks - 1), 0)

    return pl.pallas_call(
        kernel,
        out_shape=jax.ShapeDtypeStruct(
            (plan.ncores, n_terms, SUBLANE, plan.d_eff), jnp.float32),
        grid=(plan.ncores, tpc),
        in_specs=[pl.BlockSpec((plan.tile_rows, plan.d_eff), data_map)
                  for _ in arrays],
        out_specs=pl.BlockSpec((1, n_terms, SUBLANE, plan.d_eff),
                               lambda c, i: (c, 0, 0, 0)),
        compiler_params=pltpu.CompilerParams(
            dimension_semantics=("parallel", "arbitrary"),
            vmem_limit_bytes=_VMEM_LIMIT_BYTES),
    )(*arrays)


def _finish(raw, weights, plan: _Plan):
    # raw: (ncores, n_terms, 8, d_eff) f32 partial sums of squares.
    w_eff = jnp.tile(weights.astype(jnp.float32), plan.group)   # (d_eff,)
    partial = jnp.sum(raw, axis=(0, 2))                         # (n_terms, d_eff)
    return partial @ w_eff                                      # (n_terms,)


# ----------------------------------------------------------------------------
# Weighted-sum helpers (return SUMS; the wrapper divides to get means).
# ----------------------------------------------------------------------------
def _jnp_pair_sum(p, t, w):
    d = p.astype(jnp.float32) - t.astype(jnp.float32)
    return jnp.sum((d * d) @ w)


def _jnp_square_sum(x, w):
    x = x.astype(jnp.float32)
    return jnp.sum((x * x) @ w)


def weighted_sq_diff_sum(p, t, w, max_rows_per_tile=None):
    n, d = p.shape
    itemsize = max(p.dtype.itemsize, t.dtype.itemsize)
    plan = _plan(n, d, itemsize, 2, max_rows_per_tile)
    if plan is None:
        return _jnp_pair_sum(p, t, w)
    kernel, n_terms = _build_kernel(plan, "diff")
    arrays = [p.reshape(plan.rows, plan.d_eff), t.reshape(plan.rows, plan.d_eff)]
    return _finish(_launch(kernel, n_terms, arrays, plan), w, plan)[0]


def weighted_square_sum(x, w, max_rows_per_tile=None):
    n, d = x.shape
    plan = _plan(n, d, x.dtype.itemsize, 1, max_rows_per_tile)
    if plan is None:
        return _jnp_square_sum(x, w)
    kernel, n_terms = _build_kernel(plan, "square")
    arrays = [x.reshape(plan.rows, plan.d_eff)]
    return _finish(_launch(kernel, n_terms, arrays, plan), w, plan)[0]


def weighted_fused_sums(p, t, b, w, max_rows_per_tile=None):
    n, d = p.shape
    itemsize = max(a.dtype.itemsize for a in (p, t, b))
    plan = _plan(n, d, itemsize, 3, max_rows_per_tile)
    if plan is None:
        return _jnp_pair_sum(p, t, w), _jnp_square_sum(b, w)
    kernel, n_terms = _build_kernel(plan, "fused")
    arrays = [a.reshape(plan.rows, plan.d_eff) for a in (p, t, b)]
    s = _finish(_launch(kernel, n_terms, arrays, plan), w, plan)
    return s[0], s[1]


# ----------------------------------------------------------------------------
# Module wrapper (matches the PyTorch forward semantics).
# ----------------------------------------------------------------------------
class WeightedMeanSquaredLoss:
    def __init__(self, horizon: int = 20, no_weight: bool = False):
        self.weights = make_weights(horizon, no_weight)   # (2 * horizon,) f32
        self.d = int(self.weights.shape[0])

    def __call__(self, preds, targets, be_static=None):
        d = self.d
        if preds.shape[-1] != d or preds.shape != targets.shape:
            raise ValueError(
                f"preds/targets must be (..., {d}) and equal-shaped; got "
                f"{preds.shape} vs {targets.shape}")
        p = preds.reshape(-1, d)     # free reshape, dtype preserved (bf16 OK)
        t = targets.reshape(-1, d)
        n1 = p.shape[0]
        w = self.weights

        has_be = be_static is not None and be_static.size > 0
        if has_be:
            if be_static.shape[-1] != d:
                raise ValueError(f"be_static last dim must be {d}")
            b = be_static.reshape(-1, d)
            n2 = b.shape[0]
            if b.shape == p.shape:
                s1, s2 = weighted_fused_sums(p, t, b, w)
            else:
                s1 = weighted_sq_diff_sum(p, t, w)
                s2 = weighted_square_sum(b, w)
            return s1 / n1 + 0.1 * (s2 / n2)
        return weighted_sq_diff_sum(p, t, w) / n1


if __name__ == "__main__":
    horizon = 20
    D = 2 * horizon          # 40

    key = jax.random.PRNGKey(0)
    keys = jax.random.split(key, 8)

    loss_fn = WeightedMeanSquaredLoss(horizon=horizon)
    w = loss_fn.weights

    def ref_pair_mean(p, t):
        p32, t32 = p.astype(jnp.float32), t.astype(jnp.float32)
        return jnp.mean(((p32 - t32) ** 2) @ w)

    def ref_sq_mean(x):
        return jnp.mean((x.astype(jnp.float32) ** 2) @ w)

    def check(name, got, want, rtol=3e-5, atol=1e-6):
        got = jax.block_until_ready(got)
        assert jnp.allclose(got, want, rtol=rtol, atol=atol), (name, got, want)

    # 1) tiny input -> jnp fast path (no pallas launch).
    p0 = jax.random.normal(keys[0], (8, D), dtype=jnp.float32)
    t0 = jax.random.normal(keys[1], (8, D), dtype=jnp.float32)
    check("fast_path", loss_fn(p0, t0), ref_pair_mean(p0, t0))

    # 2) kernel path, fully lane-dense grouping (N % 16 == 0).
    N = 256
    p1 = jax.random.normal(keys[2], (N, D), dtype=jnp.float32)
    t1 = jax.random.normal(keys[3], (N, D), dtype=jnp.float32)
    b1 = jax.random.normal(keys[4], (N, D), dtype=jnp.float32)
    check("pair", loss_fn(p1, t1), ref_pair_mean(p1, t1))

    # 3) fused be_static path (same shape -> single 3-input launch).
    check("fused", loss_fn(p1, t1, b1),
          ref_pair_mean(p1, t1) + 0.1 * ref_sq_mean(b1))

    # 4) be_static with a different batch -> separate launches (squares kernel).
    b2 = jax.random.normal(keys[5], (240, D), dtype=jnp.float32)
    check("split_be", loss_fn(p1, t1, b2),
          ref_pair_mean(p1, t1) + 0.1 * ref_sq_mean(b2))

    # 5) bf16 streamed end-to-end (kernel upcasts internally).
    pb, tb = p1.astype(jnp.bfloat16), t1.astype(jnp.bfloat16)
    check("bf16", loss_fn(pb, tb), ref_pair_mean(pb, tb))

    # 6) multi-tile grid + 2-slice "parallel" core split (forced small tiles).
    s = weighted_sq_diff_sum(p1, t1, w, max_rows_per_tile=8)
    check("multi_tile", s / N, ref_pair_mean(p1, t1))

    # 7) ragged tail: N=300 -> grouping g=4, 75 packed rows, 3 blocks split over
    #    2 core-slices -> exercises the masked partial block AND the clamped,
    #    fully-masked duplicate block.
    N2 = 300
    p2 = jax.random.normal(keys[6], (N2, D), dtype=jnp.float32)
    t2 = jax.random.normal(keys[7], (N2, D), dtype=jnp.float32)
    s2 = weighted_sq_diff_sum(p2, t2, w, max_rows_per_tile=32)
    check("ragged", s2 / N2, ref_pair_mean(p2, t2))

    print("KERNEL_OK")
</pallas_src>

<mosaic_0001>
module attributes {stable_mosaic.version = 11 : i64} {
  func.func @kernel(%arg0: i32, %arg1: i32, %arg2: memref<16x640xf32, #tpu.memory_space<vmem>>, %arg3: memref<16x640xf32, #tpu.memory_space<vmem>>, %arg4: memref<1x1x8x640xf32, #tpu.memory_space<vmem>>) attributes {dimension_semantics = [#tpu.dimension_semantics<parallel>, #tpu.dimension_semantics<arbitrary>], iteration_bounds = array<i64: 1, 1>, scalar_prefetch = 0 : i64, scratch_operands = 0 : i64, tpu.core_type = #tpu.core_type<tc>, window_params = [{transform_indices = @transform_0, window_bounds = array<i64: 16, 640>}, {transform_indices = @transform_1, window_bounds = array<i64: 16, 640>}, {transform_indices = @transform_2, window_bounds = array<i64: 1, 1, 8, 640>}]} {
    %c0_i32 = arith.constant 0 : i32
    %0 = arith.cmpi eq, %arg1, %c0_i32 : i32
    %1 = arith.extui %0 : i1 to i32
    %c0_i32_0 = arith.constant 0 : i32
    %2 = arith.cmpi ne, %1, %c0_i32_0 : i32
    scf.if %2 {
      %cst = arith.constant 0.000000e+00 : f32
      %18 = vector.broadcast %cst : f32 to vector<1x1x8x640xf32>
      %c0_10 = arith.constant 0 : index
      %c0_11 = arith.constant 0 : index
      %c0_12 = arith.constant 0 : index
      %c0_13 = arith.constant 0 : index
      %19 = vector.load %arg4[%c0_10, %c0_11, %c0_12, %c0_13] : memref<1x1x8x640xf32, #tpu.memory_space<vmem>>, vector<1x1x8x640xf32>
      tpu.vector_store %arg4[%c0_10, %c0_11, %c0_12, %c0_13], %18 {strides = array<i32>} : memref<1x1x8x640xf32, #tpu.memory_space<vmem>>, vector<1x1x8x640xf32>,
    } else {
    }
    %c1_i32 = arith.constant 1 : i32
    %3 = arith.muli %arg0, %c1_i32 : i32
    %4 = arith.addi %3, %arg1 : i32
    %c16_i32 = arith.constant 16 : i32
    %5 = arith.muli %4, %c16_i32 : i32
    %c0 = arith.constant 0 : index
    %c0_1 = arith.constant 0 : index
    %6 = vector.load %arg2[%c0, %c0_1] : memref<16x640xf32, #tpu.memory_space<vmem>>, vector<16x640xf32>
    %c0_2 = arith.constant 0 : index
    %c0_3 = arith.constant 0 : index
    %7 = vector.load %arg3[%c0_2, %c0_3] : memref<16x640xf32, #tpu.memory_space<vmem>>, vector<16x640xf32>
    %8 = arith.subf %6, %7 : vector<16x640xf32>
    %9 = arith.mulf %8, %8 : vector<16x640xf32>
    %c16_i32_4 = arith.constant 16 : i32
    %10 = arith.addi %5, %c16_i32_4 : i32
    %c16_i32_5 = arith.constant 16 : i32
    %11 = arith.cmpi sle, %10, %c16_i32_5 : i32
    %12 = arith.extui %11 : i1 to i32
    %c0_i32_6 = arith.constant 0 : i32
    %13 = arith.cmpi ne, %12, %c0_i32_6 : i32
    scf.if %13 {
      %c0_10 = arith.constant 0 : index
      %c0_11 = arith.constant 0 : index
      %c0_12 = arith.constant 0 : index
      %c0_13 = arith.constant 0 : index
      %18 = vector.load %arg4[%c0_10, %c0_11, %c0_12, %c0_13] : memref<1x1x8x640xf32, #tpu.memory_space<vmem>>, vector<1x1x8x640xf32>
      %19 = vector.shape_cast %18 : vector<1x1x8x640xf32> to vector<8x640xf32>
      %20 = vector.shape_cast %9 : vector<16x640xf32> to vector<2x8x640xf32>
      %cst = arith.constant dense<0.000000e+00> : vector<8x640xf32>
      %21 = vector.multi_reduction <add>, %20, %cst [0] : vector<2x8x640xf32> to vector<8x640xf32>
      %22 = arith.addf %19, %21 : vector<8x640xf32>
      %c0_14 = arith.constant 0 : index
      %c0_15 = arith.constant 0 : index
      %c0_16 = arith.constant 0 : index
      %c0_17 = arith.constant 0 : index
      %23 = vector.load %arg4[%c0_14, %c0_15, %c0_16, %c0_17] : memref<1x1x8x640xf32, #tpu.memory_space<vmem>>, vector<1x1x8x640xf32>
      %24 = vector.shape_cast %23 : vector<1x1x8x640xf32> to vector<8x640xf32>
      %25 = vector.shape_cast %22 : vector<8x640xf32> to vector<1x1x8x640xf32>
      tpu.vector_store %arg4[%c0_14, %c0_15, %c0_16, %c0_17], %25 {strides = array<i32>} : memref<1x1x8x640xf32, #tpu.memory_space<vmem>>, vector<1x1x8x640xf32>,
    } else {
    }
    %c16_i32_7 = arith.constant 16 : i32
    %14 = arith.addi %5, %c16_i32_7 : i32
    %c16_i32_8 = arith.constant 16 : i32
    %15 = arith.cmpi sgt, %14, %c16_i32_8 : i32
    %16 = arith.extui %15 : i1 to i32
    %c0_i32_9 = arith.constant 0 : i32
    %17 = arith.cmpi ne, %16, %c0_i32_9 : i32
    scf.if %17 {
      %18 = tpu.iota {dimensions = array<i32: 0>} : vector<16x1xi32>
      %19 = vector.broadcast %5 : i32 to vector<16x1xi32>
      %20 = arith.addi %18, %19 : vector<16x1xi32>
      %c16_i32_10 = arith.constant 16 : i32
      %21 = vector.broadcast %c16_i32_10 : i32 to vector<16x1xi32>
      %22 = arith.cmpi slt, %20, %21 : vector<16x1xi32>
      %c0_11 = arith.constant 0 : index
      %c0_12 = arith.constant 0 : index
      %c0_13 = arith.constant 0 : index
      %c0_14 = arith.constant 0 : index
      %23 = vector.load %arg4[%c0_11, %c0_12, %c0_13, %c0_14] : memref<1x1x8x640xf32, #tpu.memory_space<vmem>>, vector<1x1x8x640xf32>
      %24 = vector.shape_cast %23 : vector<1x1x8x640xf32> to vector<8x640xf32>
      %cst = arith.constant 0.000000e+00 : f32
      %25 = vector.shape_cast %22 : vector<16x1xi1> to vector<16x1xi1>
      %26 = vector.broadcast %25 : vector<16x1xi1> to vector<16x640xi1>
      %27 = vector.broadcast %cst : f32 to vector<16x640xf32>
      %28 = arith.select %26, %9, %27 : vector<16x640xi1>, vector<16x640xf32>
      %29 = vector.shape_cast %28 : vector<16x640xf32> to vector<2x8x640xf32>
      %cst_15 = arith.constant dense<0.000000e+00> : vector<8x640xf32>
      %30 = vector.multi_reduction <add>, %29, %cst_15 [0] : vector<2x8x640xf32> to vector<8x640xf32>
      %31 = arith.addf %24, %30 : vector<8x640xf32>
      %c0_16 = arith.constant 0 : index
      %c0_17 = arith.constant 0 : index
      %c0_18 = arith.constant 0 : index
      %c0_19 = arith.constant 0 : index
      %32 = vector.load %arg4[%c0_16, %c0_17, %c0_18, %c0_19] : memref<1x1x8x640xf32, #tpu.memory_space<vmem>>, vector<1x1x8x640xf32>
      %33 = vector.shape_cast %32 : vector<1x1x8x640xf32> to vector<8x640xf32>
      %34 = vector.shape_cast %31 : vector<8x640xf32> to vector<1x1x8x640xf32>
      tpu.vector_store %arg4[%c0_16, %c0_17, %c0_18, %c0_19], %34 {strides = array<i32>} : memref<1x1x8x640xf32, #tpu.memory_space<vmem>>, vector<1x1x8x640xf32>,
    } else {
    }
    return
  }
  func.func @transform_0(%arg0: i32, %arg1: i32) -> (i32, i32) {
    %c1_i32 = arith.constant 1 : i32
    %0 = arith.muli %arg0, %c1_i32 : i32
    %1 = arith.addi %0, %arg1 : i32
    %c0_i32 = arith.constant 0 : i32
    %c0_i32_0 = arith.constant 0 : i32
    return %1, %c0_i32 : i32, i32
  }
  func.func @transform_1(%arg0: i32, %arg1: i32) -> (i32, i32) {
    %c1_i32 = arith.constant 1 : i32
    %0 = arith.muli %arg0, %c1_i32 : i32
    %1 = arith.addi %0, %arg1 : i32
    %c0_i32 = arith.constant 0 : i32
    %c0_i32_0 = arith.constant 0 : i32
    return %1, %c0_i32 : i32, i32
  }
  func.func @transform_2(%arg0: i32, %arg1: i32) -> (i32, i32, i32, i32) {
    %c0_i32 = arith.constant 0 : i32
    %c0_i32_0 = arith.constant 0 : i32
    %c0_i32_1 = arith.constant 0 : i32
    %c0_i32_2 = arith.constant 0 : i32
    return %arg0, %c0_i32, %c0_i32_0, %c0_i32_1 : i32, i32, i32, i32
  }
}

</mosaic_0001>

<llo_original>
// kernel: tpu_custom_call.1
$region0: #{tpu_custom_call.1}
  #allocation0 [shape = 'u32[]', space=smem, size = 0x4, offset = 0x4, fixed_abs, tag = 'smem constant byte address 0x4 - core index']
  #allocation1 [shape = 'u32[144,128]{1,0:T(1,128)}', space=vmem, size = 0x12000, scoped, tag = 'internal scratch']
  %s0 = inlined_call_operand.hbm [shape: f32[16,640], index: 0, kind: input, shape index: {}]
  %s1 = inlined_call_operand.hbm [shape: f32[16,640], index: 1, kind: input, shape index: {}]
  %s2 = inlined_call_operand.hbm [shape: f32[1,1,8,640], index: 2, kind: output, shape index: {}]
  %s3 = sld [smem:[#allocation0]]
  $region38: #{tpu_custom_call.1} parent=0
    _
  %s5 = ssub.s32 1, %s3
  %s6 = scalar_select 0, %s5, %s3
  $region1: #{tpu_custom_call.1} parent=0
    #allocation2 [shape = 'u8[40960]{0}', space=vmem, size = 0xa000, scoped, tag = 'input window, operand 0, single buffered']
    #allocation3 [shape = 's32[1]{0}', space=sflag, size = 0x4, scoped, tag = 'scoped memory for tpu_custom_call.1']
    #allocation4 [shape = 's32[1]{0}', space=sflag, size = 0x4, scoped, tag = 'scoped memory for tpu_custom_call.1']
    #allocation5 [shape = 'u8[40960]{0}', space=vmem, size = 0xa000, scoped, tag = 'input window, operand 1, single buffered']
    #allocation6 [shape = 's32[1]{0}', space=sflag, size = 0x4, scoped, tag = 'scoped memory for tpu_custom_call.1']
    #allocation7 [shape = 'u8[20480]{0}', space=vmem, size = 0x5000, scoped, tag = 'output window, operand 0, single buffered']
    %7 = vsyncpa [#allocation3], 0
    %8 = vsyncpa [#allocation6], 0
    %9 = vsyncpa [#allocation4], 0
    // Predicated region
    $region2: #{tpu_custom_call.1} parent=1 // pred_check
      _
    $region3: #{tpu_custom_call.1} parent=1 // pred_check_branch
      %11 = sbr.rel (0) target = $region5
    $region4: #{tpu_custom_call.1} parent=1 // pred_region
      %s12 = sadd.s32 0, 0
      %s13 = smul.u32 2, %s12
      %s15 = ssub.s32 1280, 1280
      %16 = vsyncadd [#allocation3], %s15
      %s17 = smul.addr %s13, 5
      %s18 = smul.addr %s17, 128
      %s19 = scalar_lea.hbm %s0, %s18
      %s20 = sshll.u32 [#allocation2], 4
      %s21 = int_to_ptr.vmem [resolvable:$true] %s20
      %26 = dma.hbm_to_vmem [thread:$0]  %s19, 1280, %s21, [#allocation3], 640, 640, 40
    $region5: #{tpu_custom_call.1} parent=1 // pred_fallthru
      _
    // Predicated region
    $region6: #{tpu_custom_call.1} parent=1 // pred_check
      _
    $region7: #{tpu_custom_call.1} parent=1 // pred_check_branch
      %28 = sbr.rel (0) target = $region9
    $region8: #{tpu_custom_call.1} parent=1 // pred_region
      %s29 = sadd.s32 0, 0
      %s30 = smul.u32 2, %s29
      %s32 = ssub.s32 1280, 1280
      %33 = vsyncadd [#allocation6], %s32
      %s34 = smul.addr %s30, 5
      %s35 = smul.addr %s34, 128
      %s36 = scalar_lea.hbm %s1, %s35
      %s37 = sshll.u32 [#allocation5], 4
      %s38 = int_to_ptr.vmem [resolvable:$true] %s37
      %43 = dma.hbm_to_vmem [thread:$0]  %s36, 1280, %s38, [#allocation6], 640, 640, 40
    $region9: #{tpu_custom_call.1} parent=1 // pred_fallthru
      _
    // Predicated region
    $region10: #{tpu_custom_call.1} parent=1 // pred_check
      _
    $region11: #{tpu_custom_call.1} parent=1 // pred_check_branch
      %45 = sbr.rel (0) target = $region13
    $region12: #{tpu_custom_call.1} parent=1 // pred_region
      %46 = dma.done [#allocation3], 1280
    $region13: #{tpu_custom_call.1} parent=1 // pred_fallthru
      _
    // Predicated region
    $region14: #{tpu_custom_call.1} parent=1 // pred_check
      _
    $region15: #{tpu_custom_call.1} parent=1 // pred_check_branch
      %48 = sbr.rel (0) target = $region17
    $region16: #{tpu_custom_call.1} parent=1 // pred_region
      %49 = dma.done [#allocation6], 1280
    $region17: #{tpu_custom_call.1} parent=1 // pred_fallthru
      _
    %s50 = sadd.s32 0, 0
    %s51 = smul.u32 2, %s50
    %s52 = sadd.s32 0, 0
    %s53 = smul.u32 2, %s52
    %p54 = scmp.eq.s32.totalorder 0, 0
    // Predicated region
    $region18: #{tpu_custom_call.1} parent=1 // pred_check
      %p55 = pneg %p54
    $region19: #{tpu_custom_call.1} parent=1 // pred_check_branch
      %57 = sbr.rel (%p55) target = $region21
    $region20: #{tpu_custom_call.1} parent=1 // pred_region
      %58 = vst [vmem:[#allocation7] sm:$0xff] 0.0
      %59 = vst [vmem:[#allocation7 + $0x8] sm:$0xff] 0.0
      %60 = vst [vmem:[#allocation7 + $0x10] sm:$0xff] 0.0
      %61 = vst [vmem:[#allocation7 + $0x18] sm:$0xff] 0.0
      %62 = vst [vmem:[#allocation7 + $0x20] sm:$0xff] 0.0
    $region21: #{tpu_custom_call.1} parent=1 // pred_fallthru
      _
    %s63 = sadd.s32 0, 0
    %s64 = smul.u32 %s63, 16
    %v65 = vld [vmem:[#allocation2] sm:$0xff]
    %v66 = vld [vmem:[#allocation2 + $0x8] sm:$0xff]
    %v67 = vld [vmem:[#allocation2 + $0x10] sm:$0xff]
    %v68 = vld [vmem:[#allocation2 + $0x18] sm:$0xff]
    %v69 = vld [vmem:[#allocation2 + $0x20] sm:$0xff]
    %v70 = vld [vmem:[#allocation2 + $0x28] sm:$0xff]
    %v71 = vld [vmem:[#allocation2 + $0x30] sm:$0xff]
    %v72 = vld [vmem:[#allocation2 + $0x38] sm:$0xff]
    %v73 = vld [vmem:[#allocation2 + $0x40] sm:$0xff]
    %v74 = vld [vmem:[#allocation2 + $0x48] sm:$0xff]
    %v75 = vld [vmem:[#allocation5] sm:$0xff]
    %v76 = vld [vmem:[#allocation5 + $0x8] sm:$0xff]
    %v77 = vld [vmem:[#allocation5 + $0x10] sm:$0xff]
    %v78 = vld [vmem:[#allocation5 + $0x18] sm:$0xff]
    %v79 = vld [vmem:[#allocation5 + $0x20] sm:$0xff]
    %v80 = vld [vmem:[#allocation5 + $0x28] sm:$0xff]
    %v81 = vld [vmem:[#allocation5 + $0x30] sm:$0xff]
    %v82 = vld [vmem:[#allocation5 + $0x38] sm:$0xff]
    %v83 = vld [vmem:[#allocation5 + $0x40] sm:$0xff]
    %v84 = vld [vmem:[#allocation5 + $0x48] sm:$0xff]
    %v85 = vsub.f32 %v65, %v75
    %v86 = vsub.f32 %v66, %v76
    %v87 = vsub.f32 %v67, %v77
    %v88 = vsub.f32 %v68, %v78
    %v89 = vsub.f32 %v69, %v79
    %v90 = vsub.f32 %v70, %v80
    %v91 = vsub.f32 %v71, %v81
    %v92 = vsub.f32 %v72, %v82
    %v93 = vsub.f32 %v73, %v83
    %v94 = vsub.f32 %v74, %v84
    %v95 = vmul.f32 %v85, %v85
    %v96 = vmul.f32 %v86, %v86
    %v97 = vmul.f32 %v87, %v87
    %v98 = vmul.f32 %v88, %v88
    %v99 = vmul.f32 %v89, %v89
    %v100 = vmul.f32 %v90, %v90
    %v101 = vmul.f32 %v91, %v91
    %v102 = vmul.f32 %v92, %v92
    %v103 = vmul.f32 %v93, %v93
    %v104 = vmul.f32 %v94, %v94
    %s105 = sadd.s32 %s64, 16
    %p106 = scmp.le.s32.totalorder %s105, 16
    // Predicated region
    $region22: #{tpu_custom_call.1} parent=1 // pred_check
      %p107 = pneg %p106
    $region23: #{tpu_custom_call.1} parent=1 // pred_check_branch
      %109 = sbr.rel (%p107) target = $region25
    $region24: #{tpu_custom_call.1} parent=1 // pred_region
      %v110 = vld [vmem:[#allocation7] sm:$0xff]
      %v111 = vld [vmem:[#allocation7 + $0x8] sm:$0xff]
      %v112 = vld [vmem:[#allocation7 + $0x10] sm:$0xff]
      %v113 = vld [vmem:[#allocation7 + $0x18] sm:$0xff]
      %v114 = vld [vmem:[#allocation7 + $0x20] sm:$0xff]
      %v115 = vadd.f32 %v95, %v100
      %v116 = vadd.f32 %v96, %v101
      %v117 = vadd.f32 %v97, %v102
      %v118 = vadd.f32 %v98, %v103
      %v119 = vadd.f32 %v99, %v104
      %v120 = vadd.f32 %v110, %v115
      %v121 = vadd.f32 %v111, %v116
      %v122 = vadd.f32 %v112, %v117
      %v123 = vadd.f32 %v113, %v118
      %v124 = vadd.f32 %v114, %v119
      %125 = vst [vmem:[#allocation7] sm:$0xff] %v120
      %126 = vst [vmem:[#allocation7 + $0x8] sm:$0xff] %v121
      %127 = vst [vmem:[#allocation7 + $0x10] sm:$0xff] %v122
      %128 = vst [vmem:[#allocation7 + $0x18] sm:$0xff] %v123
      %129 = vst [vmem:[#allocation7 + $0x20] sm:$0xff] %v124
    $region25: #{tpu_custom_call.1} parent=1 // pred_fallthru
      _
    %p130 = scmp.gt.s32.totalorder %s105, 16
    // Predicated region
    $region26: #{tpu_custom_call.1} parent=1 // pred_check
      %p131 = pneg %p130
    $region27: #{tpu_custom_call.1} parent=1 // pred_check_branch
      %133 = sbr.rel (%p131) target = $region29
    $region28: #{tpu_custom_call.1} parent=1 // pred_region
      %v134 = vlaneseq
      %v135 = vshrl.u32 %v134, 7
      %v136 = vadd.s32 %v135, 8
      %v137 = vstv %s64
      %v138 = vadd.s32 %v135, %v137
      %v139 = vadd.s32 %v136, %v137
      %vm140 = vcmp.lt.s32.totalorder %v138, 16
      %vm141 = vcmp.lt.s32.totalorder %v139, 16
      %v142 = vld [vmem:[#allocation7] sm:$0xff]
      %v143 = vld [vmem:[#allocation7 + $0x8] sm:$0xff]
      %v144 = vld [vmem:[#allocation7 + $0x10] sm:$0xff]
      %v145 = vld [vmem:[#allocation7 + $0x18] sm:$0xff]
      %v146 = vld [vmem:[#allocation7 + $0x20] sm:$0xff]
      %v147 = vsel %vm140, 1, 0
      %v148 = vsel %vm141, 1, 0
      %vm149 = vcmp.eq.s32.totalorder %v147, 1
      %vm150 = vcmp.eq.s32.totalorder %v148, 1
      %v151 = vsel %vm149, %v95, 0.0
      %v152 = vsel %vm149, %v96, 0.0
      %v153 = vsel %vm149, %v97, 0.0
      %v154 = vsel %vm149, %v98, 0.0
      %v155 = vsel %vm149, %v99, 0.0
      %v156 = vsel %vm150, %v100, 0.0
      %v157 = vsel %vm150, %v101, 0.0
      %v158 = vsel %vm150, %v102, 0.0
      %v159 = vsel %vm150, %v103, 0.0
      %v160 = vsel %vm150, %v104, 0.0
      %v161 = vadd.f32 %v151, %v156
      %v162 = vadd.f32 %v152, %v157
      %v163 = vadd.f32 %v153, %v158
      %v164 = vadd.f32 %v154, %v159
      %v165 = vadd.f32 %v155, %v160
      %v166 = vadd.f32 %v142, %v161
      %v167 = vadd.f32 %v143, %v162
      %v168 = vadd.f32 %v144, %v163
      %v169 = vadd.f32 %v145, %v164
      %v170 = vadd.f32 %v146, %v165
      %171 = vst [vmem:[#allocation7] sm:$0xff] %v166
      %172 = vst [vmem:[#allocation7 + $0x8] sm:$0xff] %v167
      %173 = vst [vmem:[#allocation7 + $0x10] sm:$0xff] %v168
      %174 = vst [vmem:[#allocation7 + $0x18] sm:$0xff] %v169
      %175 = vst [vmem:[#allocation7 + $0x20] sm:$0xff] %v170
    $region29: #{tpu_custom_call.1} parent=1 // pred_fallthru
      _
    // Predicated region
    $region30: #{tpu_custom_call.1} parent=1 // pred_check
      _
    $region31: #{tpu_custom_call.1} parent=1 // pred_check_branch
      %177 = sbr.rel (0) target = $region33
    $region32: #{tpu_custom_call.1} parent=1 // pred_region
      %s179 = ssub.s32 640, 640
      %180 = vsyncadd [#allocation4], %s179
      %s182 = sshll.u32 [#allocation7], 4
      %s183 = int_to_ptr.vmem [resolvable:$true] %s182
      %185 = dma.vmem_to_hbm [thread:$0]  %s183, 640, %s2, [#allocation4]
    $region33: #{tpu_custom_call.1} parent=1 // pred_fallthru
      _
    // Predicated region
    $region34: #{tpu_custom_call.1} parent=1 // pred_check
      _
    $region35: #{tpu_custom_call.1} parent=1 // pred_check_branch
      %187 = sbr.rel (0) target = $region37
    $region36: #{tpu_custom_call.1} parent=1 // pred_region
      %188 = dma.done [#allocation4], 640
    $region37: #{tpu_custom_call.1} parent=1 // pred_fallthru
      _
    %189 = vsyncpa [#allocation3], 1
    %190 = vsyncpa [#allocation6], 1
    %191 = vsyncpa [#allocation4], 1

</llo_original>
